<compile_context>
chip_gen: v7x
topology: tpu7x:2x2x1
jax: 0.10.0
libtpu: 0.0.40
codegen_flags: <defaults>
</compile_context>

<pallas_src>
import functools
import math

import jax
import jax.numpy as jnp
from jax import lax
from jax.experimental import pallas as pl
from jax.experimental.pallas import tpu as pltpu


def _qkv_attn_kernel(q_ref, k_ref, v_ref, o_ref, *, scale_sq, kv_len,
                     mask_keys, mm_dtype):
    # q_ref: (1, 1, Bh, C, Tq); k_ref / v_ref: (1, 1, Bh, C, Tp); o_ref: (1, Bh, C, Tq)

    # Fold both softmax scales ((q*s)·(k*s) == q·k / sqrt(C)) into the small
    # q tile instead of the big score block.
    q = (q_ref[0, 0, :, :, :].astype(jnp.float32) * scale_sq).astype(mm_dtype)
    k = k_ref[0, 0, :, :, :].astype(mm_dtype)          # (Bh, C, Tp)
    v = v_ref[0, 0, :, :, :].astype(mm_dtype)          # (Bh, C, Tp)

    # w[b, t, s] = sum_c q[b, c, t] * k[b, c, s]; contract C, batch over heads.
    # MXU matmul in mm_dtype with f32 accumulation, no explicit transposes.
    w = lax.dot_general(q, k, (((1,), (1,)), ((0,), (0,))),
                        preferred_element_type=jnp.float32)     # (Bh, Tq, Tp)

    # Numerically-stable softmax numerator, fully in f32 (matches the
    # reference's .float() softmax).
    w = w - jnp.max(w, axis=-1, keepdims=True)
    e = jnp.exp(w)                                              # values in (0, 1]
    if mask_keys:
        # Padded key columns (s >= kv_len) must not contribute to the softmax.
        key_pos = lax.broadcasted_iota(jnp.int32, e.shape, 2)
        e = jnp.where(key_pos < kv_len, e, 0.0)

    # Deferred normalization: divide the small (Bh, C, Tq) result instead of
    # multiplying the (Bh, Tq, Tp) probability block.
    denom = jnp.sum(e, axis=-1)                                 # (Bh, Tq)

    # a[b, c, t] = sum_s v[b, c, s] * e[b, t, s]; contract keys, batch heads.
    # Same NT shape as the canonical flash q·k^T matmul.
    a = lax.dot_general(v, e.astype(mm_dtype), (((2,), (2,)), ((0,), (0,))),
                        preferred_element_type=jnp.float32)     # (Bh, C, Tq)

    a = a * (jnp.float32(1.0) / denom)[:, None, :]              # exact divide
    o_ref[0, :, :, :] = a.astype(o_ref.dtype)


def _vmem_capacity_bytes():
    try:
        return int(pltpu.get_tpu_info().vmem_capacity_bytes)
    except Exception:
        return 64 * 1024 * 1024      # conservative default (v7x per-core VMEM)


def _divisors_desc(n):
    return [d for d in range(n, 0, -1) if n % d == 0]


def _plan_tiles(H, C, Tp, in_itemsize, mm_itemsize, budget):
    """Pick (query tile, heads per block) from the true per-step footprint."""
    if Tp <= 512:
        tq_cands = [Tp]                          # full-T query block (always legal)
    else:
        tq_cands = [t for t in (512, 256, 128) if Tp % t == 0]

    def footprint(bh, tq):
        blocks = 2 * bh * C * (2 * Tp + 2 * tq) * in_itemsize   # dbl-buffered K,V,Q,O
        casts = bh * C * (2 * Tp + tq) * mm_itemsize            # in-kernel dtype copies
        score = 3 * bh * tq * Tp * 4                            # w, e, mask temps (f32)
        extra = bh * C * tq * 4 + 2 * bh * tq * 4               # f32 result + denom
        return blocks + casts + score + extra

    for tq in tq_cands:
        for bh in _divisors_desc(H):
            if footprint(bh, tq) <= budget:
                return tq, bh
    return tq_cands[-1], 1


def qkv_attention(qkv, n_heads, matmul_dtype=None):
    """qkv: [N, 3*H*C, T] -> [N, H*C, T], matching QKVAttention.forward.

    matmul_dtype: optional dtype for the two MXU matmuls (e.g. jnp.bfloat16 on
    f32 inputs for higher MXU throughput); softmax and accumulation stay f32.
    """
    N, width, T = qkv.shape
    assert width % (3 * n_heads) == 0
    ch = width // (3 * n_heads)
    scale_sq = 1.0 / math.sqrt(ch)          # == (ch ** -0.25) ** 2, folded into q

    in_dtype = jnp.dtype(qkv.dtype)
    mm_dtype = jnp.dtype(matmul_dtype) if matmul_dtype is not None else in_dtype

    # Free view, no HBM copy (unlike jnp.split): axis 1 decomposes as (3, H, C).
    qkv5 = qkv.reshape(N, 3, n_heads, ch, T)

    # Pad long, non-128-aligned sequences so the query axis can be tiled; the
    # padded key columns are masked inside the kernel.
    Tp, mask_keys = T, False
    if T > 512 and T % 128 != 0:
        Tp = ((T + 127) // 128) * 128
        mask_keys = True
        qkv5 = jnp.pad(qkv5, ((0, 0), (0, 0), (0, 0), (0, 0), (0, Tp - T)))

    in_itemsize = in_dtype.itemsize
    mm_itemsize = 0 if mm_dtype == in_dtype else jnp.dtype(mm_dtype).itemsize

    vmem_cap = _vmem_capacity_bytes()                       # 64 MiB v7x, 128 MiB v5e/v6e
    budget = min(int(vmem_cap * 0.65), 96 * 1024 * 1024)    # planning budget
    vmem_limit = min(int(vmem_cap * 0.85), 120 * 1024 * 1024)

    tq, bh = _plan_tiles(n_heads, ch, Tp, in_itemsize, mm_itemsize, budget)
    grid = (N, n_heads // bh, Tp // tq)      # qt innermost: K/V blocks stay resident

    q_spec = pl.BlockSpec((1, 1, bh, ch, tq), lambda n, hb, qt: (n, 0, hb, 0, qt))
    k_spec = pl.BlockSpec((1, 1, bh, ch, Tp), lambda n, hb, qt: (n, 1, hb, 0, 0))
    v_spec = pl.BlockSpec((1, 1, bh, ch, Tp), lambda n, hb, qt: (n, 2, hb, 0, 0))
    o_spec = pl.BlockSpec((1, bh, ch, tq), lambda n, hb, qt: (n, hb, 0, qt))

    cost = pl.CostEstimate(
        flops=4 * N * n_heads * ch * Tp * Tp,
        transcendentals=N * n_heads * Tp * Tp,
        bytes_accessed=4 * N * n_heads * ch * Tp * in_itemsize)

    kernel = functools.partial(_qkv_attn_kernel, scale_sq=scale_sq, kv_len=T,
                               mask_keys=mask_keys, mm_dtype=mm_dtype)

    out = pl.pallas_call(
        kernel,
        out_shape=jax.ShapeDtypeStruct((N, n_heads, ch, Tp), qkv.dtype),
        grid=grid,
        in_specs=[q_spec, k_spec, v_spec],
        out_specs=o_spec,
        compiler_params=pltpu.CompilerParams(
            # qt is "arbitrary" so the v7x megacore split lands on batch/heads
            # and never forces both cores to re-fetch the same K/V block.
            dimension_semantics=("parallel", "parallel", "arbitrary"),
            vmem_limit_bytes=vmem_limit),
        cost_estimate=cost,
    )(qkv5, qkv5, qkv5)

    if Tp != T:
        out = out[..., :T]
    return out.reshape(N, n_heads * ch, T)


def _reference(qkv, n_heads):
    """Pure-JAX transcription of the PyTorch forward, for verification."""
    N, width, T = qkv.shape
    ch = width // (3 * n_heads)
    q, k, v = jnp.split(qkv, 3, axis=1)
    scale = 1.0 / math.sqrt(math.sqrt(ch))
    q = (q * scale).reshape(N * n_heads, ch, T)
    k = (k * scale).reshape(N * n_heads, ch, T)
    v = v.reshape(N * n_heads, ch, T)
    w = jnp.einsum("bct,bcs->bts", q, k)
    w = jax.nn.softmax(w.astype(jnp.float32), axis=-1).astype(w.dtype)
    a = jnp.einsum("bts,bcs->bct", w, v)
    return a.reshape(N, n_heads * ch, T)


if __name__ == "__main__":
    # 1) Small shape consistent with the module: N=2, H=2, C=4, T=16.
    N, H, C, T = 2, 2, 4, 16
    qkv = jax.random.normal(jax.random.PRNGKey(0), (N, 3 * H * C, T),
                            dtype=jnp.float32)
    out = jax.block_until_ready(qkv_attention(qkv, n_heads=H))
    ref = _reference(qkv, n_heads=H)
    assert out.shape == (N, H * C, T)
    assert jnp.allclose(out, ref, atol=2e-3, rtol=2e-3)

    # 2) Multi-head blocking with 128-lane tiles.
    N2, H2, C2, T2 = 2, 4, 8, 128
    qkv2 = jax.random.normal(jax.random.PRNGKey(0), (N2, 3 * H2 * C2, T2),
                             dtype=jnp.float32)
    out2 = jax.block_until_ready(qkv_attention(qkv2, n_heads=H2))
    ref2 = _reference(qkv2, n_heads=H2)
    assert out2.shape == (N2, H2 * C2, T2)
    assert jnp.allclose(out2, ref2, atol=2e-3, rtol=2e-3)

    # 3) Long, non-128-aligned sequence: exercises the pad + key-mask path.
    N3, H3, C3, T3 = 1, 2, 8, 1000
    qkv3 = jax.random.normal(jax.random.PRNGKey(0), (N3, 3 * H3 * C3, T3),
                             dtype=jnp.float32)
    out3 = jax.block_until_ready(qkv_attention(qkv3, n_heads=H3))
    ref3 = _reference(qkv3, n_heads=H3)
    assert out3.shape == (N3, H3 * C3, T3)
    assert jnp.allclose(out3, ref3, atol=2e-3, rtol=2e-3)

    # 4) Opt-in bf16 MXU matmuls on f32 input (f32 softmax / accumulation).
    out4 = jax.block_until_ready(
        qkv_attention(qkv2, n_heads=H2, matmul_dtype=jnp.bfloat16))
    assert jnp.allclose(out4, ref2, atol=5e-2, rtol=5e-2)

    print("KERNEL_OK")
</pallas_src>

<mosaic_0001>
module attributes {stable_mosaic.version = 11 : i64} {
  func.func @_qkv_attn_kernel(%arg0: i32, %arg1: i32, %arg2: i32, %arg3: memref<1x1x2x4x16xf32, #tpu.memory_space<vmem>>, %arg4: memref<1x1x2x4x16xf32, #tpu.memory_space<vmem>>, %arg5: memref<1x1x2x4x16xf32, #tpu.memory_space<vmem>>, %arg6: memref<1x2x4x16xf32, #tpu.memory_space<vmem>>) attributes {dimension_semantics = [#tpu.dimension_semantics<parallel>, #tpu.dimension_semantics<parallel>, #tpu.dimension_semantics<arbitrary>], iteration_bounds = array<i64: 2, 1, 1>, scalar_prefetch = 0 : i64, scratch_operands = 0 : i64, tpu.core_type = #tpu.core_type<tc>, window_params = [{transform_indices = @transform_0, window_bounds = array<i64: 1, 1, 2, 4, 16>}, {transform_indices = @transform_1, window_bounds = array<i64: 1, 1, 2, 4, 16>}, {transform_indices = @transform_2, window_bounds = array<i64: 1, 1, 2, 4, 16>}, {transform_indices = @transform_3, window_bounds = array<i64: 1, 2, 4, 16>}]} {
    %c0 = arith.constant 0 : index
    %c0_0 = arith.constant 0 : index
    %c0_1 = arith.constant 0 : index
    %c0_2 = arith.constant 0 : index
    %c0_3 = arith.constant 0 : index
    %0 = vector.load %arg3[%c0, %c0_0, %c0_1, %c0_2, %c0_3] : memref<1x1x2x4x16xf32, #tpu.memory_space<vmem>>, vector<1x1x2x4x16xf32>
    %1 = vector.shape_cast %0 : vector<1x1x2x4x16xf32> to vector<2x4x16xf32>
    %cst = arith.constant 5.000000e-01 : f32
    %2 = vector.broadcast %cst : f32 to vector<2x4x16xf32>
    %3 = arith.mulf %1, %2 : vector<2x4x16xf32>
    %c0_4 = arith.constant 0 : index
    %c0_5 = arith.constant 0 : index
    %c0_6 = arith.constant 0 : index
    %c0_7 = arith.constant 0 : index
    %c0_8 = arith.constant 0 : index
    %4 = vector.load %arg4[%c0_4, %c0_5, %c0_6, %c0_7, %c0_8] : memref<1x1x2x4x16xf32, #tpu.memory_space<vmem>>, vector<1x1x2x4x16xf32>
    %5 = vector.shape_cast %4 : vector<1x1x2x4x16xf32> to vector<2x4x16xf32>
    %c0_9 = arith.constant 0 : index
    %c0_10 = arith.constant 0 : index
    %c0_11 = arith.constant 0 : index
    %c0_12 = arith.constant 0 : index
    %c0_13 = arith.constant 0 : index
    %6 = vector.load %arg5[%c0_9, %c0_10, %c0_11, %c0_12, %c0_13] : memref<1x1x2x4x16xf32, #tpu.memory_space<vmem>>, vector<1x1x2x4x16xf32>
    %7 = vector.shape_cast %6 : vector<1x1x2x4x16xf32> to vector<2x4x16xf32>
    %cst_14 = arith.constant dense<0.000000e+00> : vector<2x16x16xf32>
    %8 = tpu.matmul %3, %5, %cst_14 {dimension_numbers = #tpu.dot_dimension_numbers<[1], [1], [2], [2], [0, 0, 0, 2, 1, 2], [0], [0]>} : vector<2x4x16xf32>, vector<2x4x16xf32>, vector<2x16x16xf32> -> vector<2x16x16xf32>
    %cst_15 = arith.constant dense<0xFF800000> : vector<2x16xf32>
    %9 = vector.multi_reduction <maximumf>, %8, %cst_15 [2] : vector<2x16x16xf32> to vector<2x16xf32>
    %10 = vector.shape_cast %9 : vector<2x16xf32> to vector<2x16x1xf32>
    %11 = vector.broadcast %10 : vector<2x16x1xf32> to vector<2x16x16xf32>
    %12 = arith.subf %8, %11 : vector<2x16x16xf32>
    %13 = math.exp %12 : vector<2x16x16xf32>
    %cst_16 = arith.constant dense<0.000000e+00> : vector<2x16xf32>
    %14 = vector.multi_reduction <add>, %13, %cst_16 [2] : vector<2x16x16xf32> to vector<2x16xf32>
    %cst_17 = arith.constant dense<0.000000e+00> : vector<2x4x16xf32>
    %15 = tpu.matmul %7, %13, %cst_17 {dimension_numbers = #tpu.dot_dimension_numbers<[2], [2], [1], [1], [0, 0, 0, 1, 1, 1], [0], [0]>} : vector<2x4x16xf32>, vector<2x16x16xf32>, vector<2x4x16xf32> -> vector<2x4x16xf32>
    %cst_18 = arith.constant 1.000000e+00 : f32
    %16 = vector.broadcast %cst_18 : f32 to vector<2x16xf32>
    %17 = arith.divf %16, %14 : vector<2x16xf32>
    %18 = vector.shape_cast %17 : vector<2x16xf32> to vector<2x1x16xf32>
    %19 = vector.broadcast %18 : vector<2x1x16xf32> to vector<2x4x16xf32>
    %20 = arith.mulf %15, %19 : vector<2x4x16xf32>
    %c0_19 = arith.constant 0 : index
    %c0_20 = arith.constant 0 : index
    %c0_21 = arith.constant 0 : index
    %c0_22 = arith.constant 0 : index
    %21 = vector.load %arg6[%c0_19, %c0_20, %c0_21, %c0_22] : memref<1x2x4x16xf32, #tpu.memory_space<vmem>>, vector<1x2x4x16xf32>
    %22 = vector.shape_cast %21 : vector<1x2x4x16xf32> to vector<2x4x16xf32>
    %23 = vector.shape_cast %20 : vector<2x4x16xf32> to vector<1x2x4x16xf32>
    tpu.vector_store %arg6[%c0_19, %c0_20, %c0_21, %c0_22], %23 {strides = array<i32>} : memref<1x2x4x16xf32, #tpu.memory_space<vmem>>, vector<1x2x4x16xf32>,
    return
  }
  func.func @transform_0(%arg0: i32, %arg1: i32, %arg2: i32) -> (i32, i32, i32, i32, i32) {
    %c0_i32 = arith.constant 0 : i32
    %c0_i32_0 = arith.constant 0 : i32
    %c0_i32_1 = arith.constant 0 : i32
    return %arg0, %c0_i32, %arg1, %c0_i32_0, %arg2 : i32, i32, i32, i32, i32
  }
  func.func @transform_1(%arg0: i32, %arg1: i32, %arg2: i32) -> (i32, i32, i32, i32, i32) {
    %c1_i32 = arith.constant 1 : i32
    %c0_i32 = arith.constant 0 : i32
    %c0_i32_0 = arith.constant 0 : i32
    %c0_i32_1 = arith.constant 0 : i32
    return %arg0, %c1_i32, %arg1, %c0_i32, %c0_i32_0 : i32, i32, i32, i32, i32
  }
  func.func @transform_2(%arg0: i32, %arg1: i32, %arg2: i32) -> (i32, i32, i32, i32, i32) {
    %c2_i32 = arith.constant 2 : i32
    %c0_i32 = arith.constant 0 : i32
    %c0_i32_0 = arith.constant 0 : i32
    %c0_i32_1 = arith.constant 0 : i32
    return %arg0, %c2_i32, %arg1, %c0_i32, %c0_i32_0 : i32, i32, i32, i32, i32
  }
  func.func @transform_3(%arg0: i32, %arg1: i32, %arg2: i32) -> (i32, i32, i32, i32) {
    %c0_i32 = arith.constant 0 : i32
    %c0_i32_0 = arith.constant 0 : i32
    return %arg0, %arg1, %c0_i32, %arg2 : i32, i32, i32, i32
  }
}

</mosaic_0001>

<llo_original>
// kernel: tpu_custom_call.1
$region0: #{tpu_custom_call.1}
  #allocation0 [shape = 'u32[]', space=smem, size = 0x4, offset = 0x4, fixed_abs, tag = 'smem constant byte address 0x4 - core index']
  #allocation1 [shape = 'u32[144,128]{1,0:T(1,128)}', space=vmem, size = 0x12000, scoped, tag = 'internal scratch']
  %s0 = inlined_call_operand.hbm [shape: f32[2,3,2,4,16], index: 0, kind: input, shape index: {}]
  %s1 = inlined_call_operand.hbm [shape: f32[2,3,2,4,16], index: 1, kind: input, shape index: {}]
  %s2 = inlined_call_operand.hbm [shape: f32[2,3,2,4,16], index: 2, kind: input, shape index: {}]
  %s3 = inlined_call_operand.hbm [shape: f32[2,2,4,16], index: 3, kind: output, shape index: {}]
  %s4 = sld [smem:[#allocation0]]
  $region57: #{tpu_custom_call.1} parent=0
    _
  %s6 = ssub.s32 1, %s4
  %s7 = scalar_select 0, %s6, %s4
  $region1: #{tpu_custom_call.1} parent=0
    #allocation2 [shape = 'u8[8192]{0}', space=vmem, size = 0x2000, scoped, tag = 'input window, operand 0']
    #allocation3 [shape = 's32[2]{0}', space=sflag, size = 0x8, scoped, tag = 'scoped memory for tpu_custom_call.1']
    #allocation4 [shape = 's32[2]{0}', space=sflag, size = 0x8, scoped, tag = 'scoped memory for tpu_custom_call.1']
    #allocation5 [shape = 'u8[8192]{0}', space=vmem, size = 0x2000, scoped, tag = 'input window, operand 1']
    #allocation6 [shape = 's32[2]{0}', space=sflag, size = 0x8, scoped, tag = 'scoped memory for tpu_custom_call.1']
    #allocation7 [shape = 'u8[8192]{0}', space=vmem, size = 0x2000, scoped, tag = 'input window, operand 2']
    #allocation8 [shape = 'u8[8192]{0}', space=vmem, size = 0x2000, scoped, tag = 'output window, operand 0']
    %8 = vsyncpa [#allocation3], 0
    %s9 = scalar_lea.sflag [#allocation3], 1
    %10 = vsyncpa %s9, 0
    %11 = vsyncpa [#allocation6], 0
    %s12 = scalar_lea.sflag [#allocation6], 1
    %13 = vsyncpa %s12, 0
    %14 = vsyncpa [#allocation4], 0
    %s15 = scalar_lea.sflag [#allocation4], 1
    %16 = vsyncpa %s15, 0
    loop: start=0, step=1, limit=4
    $region2: #{tpu_custom_call.1} parent=1 // loop_pre_header
      _
    $region3: #{tpu_custom_call.1} parent=1 // loop_header
      %s18 = sphi 0, %s22
      %p19 = scmp.ge.s32.totalorder %s18, 4
      %s25 = sphi 0, %s44
      %s26 = sphi 0, %s40
      %s27 = sphi 0, %s36
      %s28 = sphi 0, %s25
      %s29 = sphi 0, %s26
      %s30 = sphi 0, %s27
      %s31 = sphi 0, %s28
      %s32 = sphi 0, %s29
      %s33 = sphi 0, %s30
      %s51 = sphi 0, %s53
      %s54 = sphi 0, %s51
      %s55 = sphi 0, %s54
      %s71 = sphi 0, %s55
      %s79 = sphi 0, %s81
      %s82 = sphi 0, %s79
      %s83 = sphi 0, %s82
      %s99 = sphi 0, %s83
      %s107 = sphi 0, %s109
      %s110 = sphi 0, %s107
      %s111 = sphi 0, %s110
      %s127 = sphi 0, %s111
      %s137 = sphi 0, %s139
      %s140 = sphi 0, %s137
      %s141 = sphi 0, %s140
      %s157 = sphi 0, %s141
    $region4: #{tpu_custom_call.1} parent=1 // loop_header_branch
      %21 = sbr.rel (%p19) target = $region8
    $region5: #{tpu_custom_call.1} parent=1 // loop_body
      %s23 = ssub.s32 %s18, 1
      %s24 = ssub.s32 %s18, 2
      %s34 = sadd.s32 1, %s27
      %p35 = scmp.ge.s32.totalorder %s34, 1
      %s36 = scalar_select %p35, 0, %s34
      %s37 = sadd.s32 1, %s26
      %s38 = scalar_select %p35, %s37, %s26
      %p39 = scmp.ge.s32.totalorder %s38, 1
      %s40 = scalar_select %p39, 0, %s38
      %s41 = sadd.s32 1, %s25
      %s42 = scalar_select %p39, %s41, %s25
      %p43 = scmp.ge.s32.totalorder %s42, 2
      %s44 = scalar_select %p43, 0, %s42
      %s45 = ssub.s32 %s25, %s44
      %s46 = ssub.s32 %s26, %s40
      %s47 = sor.u32 %s45, %s46
      %s48 = ssub.s32 %s27, %s36
      %s49 = sor.u32 %s47, %s48
      %p50 = scmp.eq.s32.totalorder %s49, 0
      %s52 = sadd.s32 %s51, 1
      %s53 = scalar_select %p50, %s51, %s52
      %p56 = pneg %p50
      %p57 = scmp.eq.s32.totalorder %s18, 1
      %p58 = por %p56, %p57
      %p59 = scmp.ne.s32.totalorder %s51, %s54
      %p60 = scmp.eq.s32.totalorder %s18, 0
      %p61 = por %p59, %p60
      %p62 = scmp.ne.s32.totalorder %s51, %s54
      %p63 = scmp.eq.s32.totalorder %s23, 1
      %p64 = por %p62, %p63
      %p65 = scmp.ne.s32.totalorder %s54, %s55
      %p66 = scmp.eq.s32.totalorder %s23, 0
      %p67 = por %p65, %p66
      %p68 = scmp.ne.s32.totalorder %s54, %s55
      %p69 = scmp.eq.s32.totalorder %s24, 1
      %p70 = por %p68, %p69
      %p72 = scmp.ne.s32.totalorder %s55, %s71
      %p73 = scmp.eq.s32.totalorder %s24, 0
      %p74 = por %p72, %p73
      %s75 = ssub.s32 %s25, %s44
      %s76 = ssub.s32 %s26, %s40
      %s77 = sor.u32 %s75, %s76
      %p78 = scmp.eq.s32.totalorder %s77, 0
      %s80 = sadd.s32 %s79, 1
      %s81 = scalar_select %p78, %s79, %s80
      %p84 = pneg %p78
      %p85 = scmp.eq.s32.totalorder %s18, 1
      %p86 = por %p84, %p85
      %p87 = scmp.ne.s32.totalorder %s79, %s82
      %p88 = scmp.eq.s32.totalorder %s18, 0
      %p89 = por %p87, %p88
      %p90 = scmp.ne.s32.totalorder %s79, %s82
      %p91 = scmp.eq.s32.totalorder %s23, 1
      %p92 = por %p90, %p91
      %p93 = scmp.ne.s32.totalorder %s82, %s83
      %p94 = scmp.eq.s32.totalorder %s23, 0
      %p95 = por %p93, %p94
      %p96 = scmp.ne.s32.totalorder %s82, %s83
      %p97 = scmp.eq.s32.totalorder %s24, 1
      %p98 = por %p96, %p97
      %p100 = scmp.ne.s32.totalorder %s83, %s99
      %p101 = scmp.eq.s32.totalorder %s24, 0
      %p102 = por %p100, %p101
      %s103 = ssub.s32 %s25, %s44
      %s104 = ssub.s32 %s26, %s40
      %s105 = sor.u32 %s103, %s104
      %p106 = scmp.eq.s32.totalorder %s105, 0
      %s108 = sadd.s32 %s107, 1
      %s109 = scalar_select %p106, %s107, %s108
      %p112 = pneg %p106
      %p113 = scmp.eq.s32.totalorder %s18, 1
      %p114 = por %p112, %p113
      %p115 = scmp.ne.s32.totalorder %s107, %s110
      %p116 = scmp.eq.s32.totalorder %s18, 0
      %p117 = por %p115, %p116
      %p118 = scmp.ne.s32.totalorder %s107, %s110
      %p119 = scmp.eq.s32.totalorder %s23, 1
      %p120 = por %p118, %p119
      %p121 = scmp.ne.s32.totalorder %s110, %s111
      %p122 = scmp.eq.s32.totalorder %s23, 0
      %p123 = por %p121, %p122
      %p124 = scmp.ne.s32.totalorder %s110, %s111
      %p125 = scmp.eq.s32.totalorder %s24, 1
      %p126 = por %p124, %p125
      %p128 = scmp.ne.s32.totalorder %s111, %s127
      %p129 = scmp.eq.s32.totalorder %s24, 0
      %p130 = por %p128, %p129
      %s131 = ssub.s32 %s25, %s44
      %s132 = ssub.s32 %s26, %s40
      %s133 = sor.u32 %s131, %s132
      %s134 = ssub.s32 %s27, %s36
      %s135 = sor.u32 %s133, %s134
      %p136 = scmp.eq.s32.totalorder %s135, 0
      %s138 = sadd.s32 %s137, 1
      %s139 = scalar_select %p136, %s137, %s138
      %p142 = pneg %p136
      %p143 = scmp.eq.s32.totalorder %s18, 1
      %p144 = por %p142, %p143
      %p145 = scmp.ne.s32.totalorder %s137, %s140
      %p146 = scmp.eq.s32.totalorder %s18, 0
      %p147 = por %p145, %p146
      %p148 = scmp.ne.s32.totalorder %s137, %s140
      %p149 = scmp.eq.s32.totalorder %s23, 1
      %p150 = por %p148, %p149
      %p151 = scmp.ne.s32.totalorder %s140, %s141
      %p152 = scmp.eq.s32.totalorder %s23, 0
      %p153 = por %p151, %p152
      %p154 = scmp.ne.s32.totalorder %s140, %s141
      %p155 = scmp.eq.s32.totalorder %s24, 1
      %p156 = por %p154, %p155
      %p158 = scmp.ne.s32.totalorder %s141, %s157
      %p159 = scmp.eq.s32.totalorder %s24, 0
      %p160 = por %p158, %p159
      %p161 = scmp.le.s32.totalorder 1, %s18
      %p162 = scmp.lt.s32.totalorder %s18, 3
      %p163 = pnand %p161, %p162
      %p164 = pneg %p163
      // Predicated region
      $region9: #{tpu_custom_call.1} parent=5 // pred_check
        _
      $region10: #{tpu_custom_call.1} parent=5 // pred_check_branch
        %166 = sbr.rel (%p163) target = $region12
      $region11: #{tpu_custom_call.1} parent=5 // pred_region
        %s167 = ssub.s32 %s18, 1
      $region12: #{tpu_custom_call.1} parent=5 // pred_fallthru
        _
      %p168 = scmp.lt.s32.totalorder %s18, 2
      // Predicated region
      $region13: #{tpu_custom_call.1} parent=5 // pred_check
        %p169 = pneg %p168
      $region14: #{tpu_custom_call.1} parent=5 // pred_check_branch
        %171 = sbr.rel (%p169) target = $region16
      $region15: #{tpu_custom_call.1} parent=5 // pred_region
        // Predicated region
        $region17: #{tpu_custom_call.1} parent=15 // pred_check
          %p172 = pneg %p61
        $region18: #{tpu_custom_call.1} parent=15 // pred_check_branch
          %174 = sbr.rel (%p172) target = $region20
        $region19: #{tpu_custom_call.1} parent=15 // pred_region
          %s175 = sand.u32 %s51, 1
          %s176 = scalar_lea.sflag [#allocation3], %s175
          %s177 = sand.u32 %s51, 1
          %s178 = smul.addr %s177, 8
          %s179 = scalar_lea.vmem [#allocation2], %s178
          %s180 = smul.u32 2, %s26
          %s182 = ssub.s32 128, 128
          %183 = vsyncadd %s176, %s182
          %s184 = sadd.s32 %s27, %s180
          %s185 = smul.addr %s25, 6
          %s186 = sadd.s32 %s184, %s185
          %s187 = smul.addr %s186, 64
          %s188 = scalar_lea.hbm %s0, %s187
          %s189 = sshll.u32 %s179, 4
          %s190 = int_to_ptr.vmem [resolvable:$true] %s189
          %195 = dma.hbm_to_vmem [thread:$0]  %s188, 128, %s190, %s176, 64, 64, 4
        $region20: #{tpu_custom_call.1} parent=15 // pred_fallthru
          _
        // Predicated region
        $region21: #{tpu_custom_call.1} parent=15 // pred_check
          %p196 = pneg %p89
        $region22: #{tpu_custom_call.1} parent=15 // pred_check_branch
          %198 = sbr.rel (%p196) target = $region24
        $region23: #{tpu_custom_call.1} parent=15 // pred_region
          %s199 = sand.u32 %s18, 1
          %s200 = scalar_lea.sflag [#allocation6], %s199
          %s201 = sand.u32 %s79, 1
          %s202 = smul.addr %s201, 8
          %s203 = scalar_lea.vmem [#allocation5], %s202
          %s204 = smul.u32 2, %s26
          %s206 = ssub.s32 128, 128
          %207 = vsyncadd %s200, %s206
          %s208 = sadd.s32 %s204, 2
          %s209 = smul.addr %s25, 6
          %s210 = sadd.s32 %s208, %s209
          %s211 = smul.addr %s210, 64
          %s212 = scalar_lea.hbm %s1, %s211
          %s213 = sshll.u32 %s203, 4
          %s214 = int_to_ptr.vmem [resolvable:$true] %s213
          %219 = dma.hbm_to_vmem [thread:$0]  %s212, 128, %s214, %s200, 64, 64, 4
        $region24: #{tpu_custom_call.1} parent=15 // pred_fallthru
          _
        // Predicated region
        $region25: #{tpu_custom_call.1} parent=15 // pred_check
          %p220 = pneg %p117
        $region26: #{tpu_custom_call.1} parent=15 // pred_check_branch
          %222 = sbr.rel (%p220) target = $region28
        $region27: #{tpu_custom_call.1} parent=15 // pred_region
          %s223 = sand.u32 %s18, 1
          %s224 = scalar_lea.sflag [#allocation6], %s223
          %s225 = sand.u32 %s107, 1
          %s226 = smul.addr %s225, 8
          %s227 = scalar_lea.vmem [#allocation7], %s226
          %s228 = smul.u32 2, %s26
          %s230 = ssub.s32 128, 128
          %231 = vsyncadd %s224, %s230
          %s232 = sadd.s32 %s228, 4
          %s233 = smul.addr %s25, 6
          %s234 = sadd.s32 %s232, %s233
          %s235 = smul.addr %s234, 64
          %s236 = scalar_lea.hbm %s2, %s235
          %s237 = sshll.u32 %s227, 4
          %s238 = int_to_ptr.vmem [resolvable:$true] %s237
          %243 = dma.hbm_to_vmem [thread:$0]  %s236, 128, %s238, %s224, 64, 64, 4
        $region28: #{tpu_custom_call.1} parent=15 // pred_fallthru
          _
      $region16: #{tpu_custom_call.1} parent=5 // pred_fallthru
        _
      %p244 = scmp.le.s32.totalorder 1, %s18
      %p245 = scmp.lt.s32.totalorder %s18, 3
      %p246 = pnand %p244, %p245
      %p247 = pneg %p246
      // Predicated region
      $region29: #{tpu_custom_call.1} parent=5 // pred_check
        _
      $region30: #{tpu_custom_call.1} parent=5 // pred_check_branch
        %249 = sbr.rel (%p246) target = $region32
      $region31: #{tpu_custom_call.1} parent=5 // pred_region
        %s250 = ssub.s32 %s18, 1
        %s251 = sand.u32 %s54, 1
        %s252 = scalar_lea.sflag [#allocation3], %s251
        %s253 = sand.u32 %s54, 1
        %s254 = smul.addr %s253, 8
        %s255 = scalar_lea.vmem [#allocation2], %s254
        // Predicated region
        $region33: #{tpu_custom_call.1} parent=31 // pred_check
          %p256 = pneg %p67
        $region34: #{tpu_custom_call.1} parent=31 // pred_check_branch
          %258 = sbr.rel (%p256) target = $region36
        $region35: #{tpu_custom_call.1} parent=31 // pred_region
          %259 = dma.done %s252, 128
        $region36: #{tpu_custom_call.1} parent=31 // pred_fallthru
          _
        %s260 = sand.u32 %s23, 1
        %s261 = scalar_lea.sflag [#allocation6], %s260
        %s262 = sand.u32 %s82, 1
        %s263 = smul.addr %s262, 8
        %s264 = scalar_lea.vmem [#allocation5], %s263
        // Predicated region
        $region37: #{tpu_custom_call.1} parent=31 // pred_check
          %p265 = pneg %p95
        $region38: #{tpu_custom_call.1} parent=31 // pred_check_branch
          %267 = sbr.rel (%p265) target = $region40
        $region39: #{tpu_custom_call.1} parent=31 // pred_region
          %268 = dma.done %s261, 128
        $region40: #{tpu_custom_call.1} parent=31 // pred_fallthru
          _
        %s269 = sand.u32 %s23, 1
        %s270 = scalar_lea.sflag [#allocation6], %s269
        %s271 = sand.u32 %s110, 1
        %s272 = smul.addr %s271, 8
        %s273 = scalar_lea.vmem [#allocation7], %s272
        // Predicated region
        $region41: #{tpu_custom_call.1} parent=31 // pred_check
          %p274 = pneg %p123
        $region42: #{tpu_custom_call.1} parent=31 // pred_check_branch
          %276 = sbr.rel (%p274) target = $region44
        $region43: #{tpu_custom_call.1} parent=31 // pred_region
          %277 = dma.done %s270, 128
        $region44: #{tpu_custom_call.1} parent=31 // pred_fallthru
          _
        %s278 = sand.u32 %s54, 1
        %s279 = scalar_lea.sflag [#allocation3], %s278
        %s280 = sand.u32 %s54, 1
        %s281 = smul.addr %s280, 8
        %s282 = scalar_lea.vmem [#allocation2], %s281
        %p283 = pneg %p67
        %p284 = pneg %p64
        %s285 = sand.u32 %s23, 1
        %s286 = scalar_lea.sflag [#allocation6], %s285
        %s287 = sand.u32 %s82, 1
        %s288 = smul.addr %s287, 8
        %s289 = scalar_lea.vmem [#allocation5], %s288
        %p290 = pneg %p95
        %p291 = pneg %p92
        %s292 = sand.u32 %s23, 1
        %s293 = scalar_lea.sflag [#allocation6], %s292
        %s294 = sand.u32 %s110, 1
        %s295 = smul.addr %s294, 8
        %s296 = scalar_lea.vmem [#allocation7], %s295
        %p297 = pneg %p123
        %p298 = pneg %p120
        %p299 = pneg %p153
        %p300 = pneg %p150
        %s301 = sand.u32 %s140, 1
        %s302 = scalar_lea.sflag [#allocation4], %s301
        %s303 = sand.u32 %s140, 1
        %s304 = smul.addr %s303, 8
        %s305 = scalar_lea.vmem [#allocation8], %s304
        %s306 = smul.u32 2, %s29
        %s307 = smul.u32 2, %s29
        %s308 = smul.u32 2, %s29
        %s309 = smul.u32 2, %s29
        %v310 = vld [vmem:[%s255] sm:$0xf]
        %v311 = vld [vmem:[%s255 + $0x4] sm:$0xf]
        %v312 = vmul.f32 %v310, 0.5
        %v313 = vmul.f32 %v311, 0.5
        %v314 = vld [vmem:[%s264] sm:$0xf]
        %v315 = vld [vmem:[%s264 + $0x4] sm:$0xf]
        %v316 = vld [vmem:[%s273] sm:$0xf]
        %v317 = vld [vmem:[%s273 + $0x4] sm:$0xf]
        %318 = vxpose.xlu0.b32.start [1/16] %v312, 128
        %319 = vxpose.xlu0.b32.cont [2/16] 0.0, 128
        %320 = vxpose.xlu0.b32.cont [3/16] 0.0, 128
        %321 = vxpose.xlu0.b32.cont [4/16] 0.0, 128
        %322 = vxpose.xlu0.b32.cont [5/16] 0.0, 128
        %323 = vxpose.xlu0.b32.cont [6/16] 0.0, 128
        %324 = vxpose.xlu0.b32.cont [7/16] 0.0, 128
        %325 = vxpose.xlu0.b32.cont [8/16] 0.0, 128
        %326 = vxpose.xlu0.b32.cont [9/16] 0.0, 128
        %327 = vxpose.xlu0.b32.cont [10/16] 0.0, 128
        %328 = vxpose.xlu0.b32.cont [11/16] 0.0, 128
        %329 = vxpose.xlu0.b32.cont [12/16] 0.0, 128
        %330 = vxpose.xlu0.b32.cont [13/16] 0.0, 128
        %331 = vxpose.xlu0.b32.cont [14/16] 0.0, 128
        %332 = vxpose.xlu0.b32.cont [15/16] 0.0, 128
        %333 = vxpose.xlu0.b32.end [16/16] 0.0, 128
        %v334 = vpop.trf.xlu0
        %v335 = vpop.trf.xlu0
        %v336 = vpop.trf.xlu0
        %v337 = vpop.trf.xlu0
        %v338 = vpop.trf.xlu0
        %v339 = vpop.trf.xlu0
        %v340 = vpop.trf.xlu0
        %v341 = vpop.trf.xlu0
        %v342 = vpop.trf.xlu0
        %v343 = vpop.trf.xlu0
        %v344 = vpop.trf.xlu0
        %v345 = vpop.trf.xlu0
        %v346 = vpop.trf.xlu0
        %v347 = vpop.trf.xlu0
        %v348 = vpop.trf.xlu0
        %v349 = vpop.trf.xlu0
        %vm350 = vcmask 31744
        %v352 = vsel %vm350, %v334, 0
        %v355 = vsel %vm350, %v335, 0
        %vm357 = vcmask 1043456
        %v359 = vsel %vm357, %v314, 0
        %361 = vmatprep.subr.mxu0 0.0
        %362 = vmatpush1.msra.mxu0 %v359
        %363 = vmatprep.subr.mxu0 0.0
        %364 = vmatpush1.msra.mxu0 0.0
        %365 = vmatprep.subr.mxu0 0.0
        %366 = vmatpush1.msra.mxu0 0.0
        %367 = vmatprep.subr.mxu0 0.0
        %368 = vmatpush1.msra.mxu0 0.0
        %369 = vmatprep.subr.mxu0 0.0
        %370 = vmatpush1.msra.mxu0 0.0
        %371 = vmatprep.subr.mxu0 0.0
        %372 = vmatpush1.msra.mxu0 0.0
        %373 = vmatprep.subr.mxu0 0.0
        %374 = vmatpush1.msra.mxu0 0.0
        %375 = vmatprep.subr.mxu0 0.0
        %376 = vmatpush1.msra.mxu0 0.0
        %377 = vmatprep.subr.mxu0 0.0
        %378 = vmatpush1.msra.mxu0 0.0
        %379 = vmatprep.subr.mxu0 0.0
        %380 = vmatpush1.msra.mxu0 0.0
        %381 = vmatprep.subr.mxu0 0.0
        %382 = vmatpush1.msra.mxu0 0.0
        %383 = vmatprep.subr.mxu0 0.0
        %384 = vmatpush1.msra.mxu0 0.0
        %385 = vmatprep.subr.mxu0 0.0
        %386 = vmatpush1.msra.mxu0 0.0
        %387 = vmatprep.subr.mxu0 0.0
        %388 = vmatpush1.msra.mxu0 0.0
        %389 = vmatprep.subr.mxu0 0.0
        %390 = vmatpush1.msra.mxu0 0.0
        %391 = vmatprep.subr.mxu0 0.0
        %392 = vmatpush1.msra.mxu0 0.0
        %393 = vmatprep.subr.mxu0 0.0
        %394 = vmatpush1.msra.mxu0 0.0
        %395 = vmatprep.subr.mxu0 0.0
        %396 = vmatpush1.msra.mxu0 0.0
        %397 = vmatprep.subr.mxu0 0.0
        %398 = vmatpush1.msra.mxu0 0.0
        %399 = vmatprep.subr.mxu0 0.0
        %400 = vmatpush1.msra.mxu0 0.0
        %401 = vmatprep.subr.mxu0 0.0
        %402 = vmatpush1.msra.mxu0 0.0
        %403 = vmatprep.subr.mxu0 0.0
        %404 = vmatpush1.msra.mxu0 0.0
        %405 = vmatprep.subr.mxu0 0.0
        %406 = vmatpush1.msra.mxu0 0.0
        %407 = vmatprep.subr.mxu0 0.0
        %408 = vmatpush1.msra.mxu0 0.0
        %409 = vmatprep.subr.mxu0 0.0
        %410 = vmatpush1.msra.mxu0 0.0
        %411 = vmatprep.subr.mxu0 0.0
        %412 = vmatpush1.msra.mxu0 0.0
        %413 = vmatprep.subr.mxu0 0.0
        %414 = vmatpush1.msra.mxu0 0.0
        %415 = vmatprep.subr.mxu0 0.0
        %416 = vmatpush1.msra.mxu0 0.0
        %417 = vmatprep.subr.mxu0 0.0
        %418 = vmatpush1.msra.mxu0 0.0
        %419 = vmatprep.subr.mxu0 0.0
        %420 = vmatpush1.msra.mxu0 0.0
        %421 = vmatprep.subr.mxu0 0.0
        %422 = vmatpush1.msra.mxu0 0.0
        %423 = vmatprep.subr.mxu0 0.0
        %424 = vmatpush1.msra.mxu0 0.0
        %425 = vmatprep.mubr.f32.mxu0 0.0
        %426 = vmatmul.mubr.f32.gmra.mrb[0].mxu0 %v352
        %v427 = vpop.f32.mrb[0].mxu0
        %v428 = vadd.f32 0.0, %v427
        %v429 = vpop.f32.mrb[0].mxu0
        %430 = vmatprep.mubr.f32.mxu0 0.0
        %431 = vmatmul.mubr.f32.gmra.mrb[0].mxu0 %v355
        %v432 = vpop.f32.mrb[0].mxu0
        %v433 = vadd.f32 0.0, %v432
        %v434 = vpop.f32.mrb[0].mxu0
        %435 = vdwg.mxu0
        %436 = vxpose.xlu0.b32.start [1/16] %v313, 128
        %437 = vxpose.xlu0.b32.cont [2/16] 0.0, 128
        %438 = vxpose.xlu0.b32.cont [3/16] 0.0, 128
        %439 = vxpose.xlu0.b32.cont [4/16] 0.0, 128
        %440 = vxpose.xlu0.b32.cont [5/16] 0.0, 128
        %441 = vxpose.xlu0.b32.cont [6/16] 0.0, 128
        %442 = vxpose.xlu0.b32.cont [7/16] 0.0, 128
        %443 = vxpose.xlu0.b32.cont [8/16] 0.0, 128
        %444 = vxpose.xlu0.b32.cont [9/16] 0.0, 128
        %445 = vxpose.xlu0.b32.cont [10/16] 0.0, 128
        %446 = vxpose.xlu0.b32.cont [11/16] 0.0, 128
        %447 = vxpose.xlu0.b32.cont [12/16] 0.0, 128
        %448 = vxpose.xlu0.b32.cont [13/16] 0.0, 128
        %449 = vxpose.xlu0.b32.cont [14/16] 0.0, 128
        %450 = vxpose.xlu0.b32.cont [15/16] 0.0, 128
        %451 = vxpose.xlu0.b32.end [16/16] 0.0, 128
        %v452 = vpop.trf.xlu0
        %v453 = vpop.trf.xlu0
        %v454 = vpop.trf.xlu0
        %v455 = vpop.trf.xlu0
        %v456 = vpop.trf.xlu0
        %v457 = vpop.trf.xlu0
        %v458 = vpop.trf.xlu0
        %v459 = vpop.trf.xlu0
        %v460 = vpop.trf.xlu0
        %v461 = vpop.trf.xlu0
        %v462 = vpop.trf.xlu0
        %v463 = vpop.trf.xlu0
        %v464 = vpop.trf.xlu0
        %v465 = vpop.trf.xlu0
        %v466 = vpop.trf.xlu0
        %v467 = vpop.trf.xlu0
        %v469 = vsel %vm350, %v452, 0
        %v472 = vsel %vm350, %v453, 0
        %v475 = vsel %vm357, %v315, 0
        %477 = vmatprep.subr.mxu0 0.0
        %478 = vmatpush1.msra.mxu0 %v475
        %479 = vmatprep.subr.mxu0 0.0
        %480 = vmatpush1.msra.mxu0 0.0
        %481 = vmatprep.subr.mxu0 0.0
        %482 = vmatpush1.msra.mxu0 0.0
        %483 = vmatprep.subr.mxu0 0.0
        %484 = vmatpush1.msra.mxu0 0.0
        %485 = vmatprep.subr.mxu0 0.0
        %486 = vmatpush1.msra.mxu0 0.0
        %487 = vmatprep.subr.mxu0 0.0
        %488 = vmatpush1.msra.mxu0 0.0
        %489 = vmatprep.subr.mxu0 0.0
        %490 = vmatpush1.msra.mxu0 0.0
        %491 = vmatprep.subr.mxu0 0.0
        %492 = vmatpush1.msra.mxu0 0.0
        %493 = vmatprep.subr.mxu0 0.0
        %494 = vmatpush1.msra.mxu0 0.0
        %495 = vmatprep.subr.mxu0 0.0
        %496 = vmatpush1.msra.mxu0 0.0
        %497 = vmatprep.subr.mxu0 0.0
        %498 = vmatpush1.msra.mxu0 0.0
        %499 = vmatprep.subr.mxu0 0.0
        %500 = vmatpush1.msra.mxu0 0.0
        %501 = vmatprep.subr.mxu0 0.0
        %502 = vmatpush1.msra.mxu0 0.0
        %503 = vmatprep.subr.mxu0 0.0
        %504 = vmatpush1.msra.mxu0 0.0
        %505 = vmatprep.subr.mxu0 0.0
        %506 = vmatpush1.msra.mxu0 0.0
        %507 = vmatprep.subr.mxu0 0.0
        %508 = vmatpush1.msra.mxu0 0.0
        %509 = vmatprep.subr.mxu0 0.0
        %510 = vmatpush1.msra.mxu0 0.0
        %511 = vmatprep.subr.mxu0 0.0
        %512 = vmatpush1.msra.mxu0 0.0
        %513 = vmatprep.subr.mxu0 0.0
        %514 = vmatpush1.msra.mxu0 0.0
        %515 = vmatprep.subr.mxu0 0.0
        %516 = vmatpush1.msra.mxu0 0.0
        %517 = vmatprep.subr.mxu0 0.0
        %518 = vmatpush1.msra.mxu0 0.0
        %519 = vmatprep.subr.mxu0 0.0
        %520 = vmatpush1.msra.mxu0 0.0
        %521 = vmatprep.subr.mxu0 0.0
        %522 = vmatpush1.msra.mxu0 0.0
        %523 = vmatprep.subr.mxu0 0.0
        %524 = vmatpush1.msra.mxu0 0.0
        %525 = vmatprep.subr.mxu0 0.0
        %526 = vmatpush1.msra.mxu0 0.0
        %527 = vmatprep.subr.mxu0 0.0
        %528 = vmatpush1.msra.mxu0 0.0
        %529 = vmatprep.subr.mxu0 0.0
        %530 = vmatpush1.msra.mxu0 0.0
        %531 = vmatprep.subr.mxu0 0.0
        %532 = vmatpush1.msra.mxu0 0.0
        %533 = vmatprep.subr.mxu0 0.0
        %534 = vmatpush1.msra.mxu0 0.0
        %535 = vmatprep.subr.mxu0 0.0
        %536 = vmatpush1.msra.mxu0 0.0
        %537 = vmatprep.subr.mxu0 0.0
        %538 = vmatpush1.msra.mxu0 0.0
        %539 = vmatprep.subr.mxu0 0.0
        %540 = vmatpush1.msra.mxu0 0.0
        %541 = vmatprep.mubr.f32.mxu0 0.0
        %542 = vmatmul.mubr.f32.gmra.mrb[0].mxu0 %v469
        %v543 = vpop.f32.mrb[0].mxu0
        %v544 = vadd.f32 0.0, %v543
        %v545 = vpop.f32.mrb[0].mxu0
        %546 = vmatprep.mubr.f32.mxu0 0.0
        %547 = vmatmul.mubr.f32.gmra.mrb[0].mxu0 %v472
        %v548 = vpop.f32.mrb[0].mxu0
        %v549 = vadd.f32 0.0, %v548
        %v550 = vpop.f32.mrb[0].mxu0
        %551 = vdwg.mxu0
        %vm552 = vcmask 130048
        %v553 = vsel %vm552, %v428, -inf
        %554 = vmax.xlane.f32.xlu0 %v553
        %v555 = vpop.xlane.xlu0 %554
        %v556 = vsel %vm552, %v433, -inf
        %557 = vmax.xlane.f32.xlu0 %v556
        %v558 = vpop.xlane.xlu0 %557
        %v559 = vsel %vm552, %v544, -inf
        %560 = vmax.xlane.f32.xlu0 %v559
        %v561 = vpop.xlane.xlu0 %560
        %v562 = vsel %vm552, %v549, -inf
        %563 = vmax.xlane.f32.xlu0 %v562
        %v564 = vpop.xlane.xlu0 %563
        %v565 = vsub.f32 %v428, %v555
        %v566 = vsub.f32 %v433, %v558
        %v567 = vsub.f32 %v544, %v561
        %v568 = vsub.f32 %v549, %v564
        %v569 = vmul.f32 %v565, 1.442695
        %v570 = vpow.pop %v569
        %v571 = vmul.f32 %v566, 1.442695
        %v572 = vpow.pop %v571
        %v573 = vmul.f32 %v567, 1.442695
        %v574 = vpow.pop %v573
        %v575 = vmul.f32 %v568, 1.442695
        %v576 = vpow.pop %v575
        %v577 = vsel %vm552, %v570, 0.0
        %578 = vadd.xlane.f32.xlu0 %v577
        %v579 = vpop.xlane.xlu0 %578
        %v580 = vsel %vm552, %v572, 0.0
        %581 = vadd.xlane.f32.xlu0 %v580
        %v582 = vpop.xlane.xlu0 %581
        %v583 = vsel %vm552, %v574, 0.0
        %584 = vadd.xlane.f32.xlu0 %v583
        %v585 = vpop.xlane.xlu0 %584
        %v586 = vsel %vm552, %v576, 0.0
        %587 = vadd.xlane.f32.xlu0 %v586
        %v588 = vpop.xlane.xlu0 %587
        %v590 = vsel %vm552, %v316, 0
        %v593 = vsel %vm552, %v570, 0
        %v596 = vsel %vm552, %v572, 0
        %598 = vmatprep.subr.mxu0 0.0
        %599 = vmatpush1.xpose.msra.mxu0 %v593
        %600 = vmatprep.subr.mxu0 0.0
        %601 = vmatpush1.xpose.msra.mxu0 %v596
        %602 = vmatprep.subr.mxu0 0.0
        %603 = vmatpush1.xpose.msra.mxu0 0.0
        %604 = vmatprep.subr.mxu0 0.0
        %605 = vmatpush1.xpose.msra.mxu0 0.0
        %606 = vmatprep.subr.mxu0 0.0
        %607 = vmatpush1.xpose.msra.mxu0 0.0
        %608 = vmatprep.subr.mxu0 0.0
        %609 = vmatpush1.xpose.msra.mxu0 0.0
        %610 = vmatprep.subr.mxu0 0.0
        %611 = vmatpush1.xpose.msra.mxu0 0.0
        %612 = vmatprep.subr.mxu0 0.0
        %613 = vmatpush1.xpose.msra.mxu0 0.0
        %614 = vmatprep.subr.mxu0 0.0
        %615 = vmatpush1.xpose.msra.mxu0 0.0
        %616 = vmatprep.subr.mxu0 0.0
        %617 = vmatpush1.xpose.msra.mxu0 0.0
        %618 = vmatprep.subr.mxu0 0.0
        %619 = vmatpush1.xpose.msra.mxu0 0.0
        %620 = vmatprep.subr.mxu0 0.0
        %621 = vmatpush1.xpose.msra.mxu0 0.0
        %622 = vmatprep.subr.mxu0 0.0
        %623 = vmatpush1.xpose.msra.mxu0 0.0
        %624 = vmatprep.subr.mxu0 0.0
        %625 = vmatpush1.xpose.msra.mxu0 0.0
        %626 = vmatprep.subr.mxu0 0.0
        %627 = vmatpush1.xpose.msra.mxu0 0.0
        %628 = vmatprep.subr.mxu0 0.0
        %629 = vmatpush1.xpose.msra.mxu0 0.0
        %630 = vmatprep.subr.mxu0 0.0
        %631 = vmatpush1.xpose.msra.mxu0 0.0
        %632 = vmatprep.subr.mxu0 0.0
        %633 = vmatpush1.xpose.msra.mxu0 0.0
        %634 = vmatprep.subr.mxu0 0.0
        %635 = vmatpush1.xpose.msra.mxu0 0.0
        %636 = vmatprep.subr.mxu0 0.0
        %637 = vmatpush1.xpose.msra.mxu0 0.0
        %638 = vmatprep.subr.mxu0 0.0
        %639 = vmatpush1.xpose.msra.mxu0 0.0
        %640 = vmatprep.subr.mxu0 0.0
        %641 = vmatpush1.xpose.msra.mxu0 0.0
        %642 = vmatprep.subr.mxu0 0.0
        %643 = vmatpush1.xpose.msra.mxu0 0.0
        %644 = vmatprep.subr.mxu0 0.0
        %645 = vmatpush1.xpose.msra.mxu0 0.0
        %646 = vmatprep.subr.mxu0 0.0
        %647 = vmatpush1.xpose.msra.mxu0 0.0
        %648 = vmatprep.subr.mxu0 0.0
        %649 = vmatpush1.xpose.msra.mxu0 0.0
        %650 = vmatprep.subr.mxu0 0.0
        %651 = vmatpush1.xpose.msra.mxu0 0.0
        %652 = vmatprep.subr.mxu0 0.0
        %653 = vmatpush1.xpose.msra.mxu0 0.0
        %654 = vmatprep.subr.mxu0 0.0
        %655 = vmatpush1.xpose.msra.mxu0 0.0
        %656 = vmatprep.subr.mxu0 0.0
        %657 = vmatpush1.xpose.msra.mxu0 0.0
        %658 = vmatprep.subr.mxu0 0.0
        %659 = vmatpush1.xpose.msra.mxu0 0.0
        %660 = vmatprep.subr.mxu0 0.0
        %661 = vmatpush1.xpose.msra.mxu0 0.0
        %662 = vmatprep.mubr.f32.mxu0 0.0
        %663 = vmatmul.mubr.f32.gmra.mrb[0].mxu0 %v590
        %v664 = vpop.f32.mrb[0].mxu0
        %v665 = vadd.f32 0.0, %v664
        %v666 = vpop.f32.mrb[0].mxu0
        %667 = vdwg.mxu0
        %v669 = vsel %vm552, %v317, 0
        %v672 = vsel %vm552, %v574, 0
        %v675 = vsel %vm552, %v576, 0
        %677 = vmatprep.subr.mxu0 0.0
        %678 = vmatpush1.xpose.msra.mxu0 %v672
        %679 = vmatprep.subr.mxu0 0.0
        %680 = vmatpush1.xpose.msra.mxu0 %v675
        %681 = vmatprep.subr.mxu0 0.0
        %682 = vmatpush1.xpose.msra.mxu0 0.0
        %683 = vmatprep.subr.mxu0 0.0
        %684 = vmatpush1.xpose.msra.mxu0 0.0
        %685 = vmatprep.subr.mxu0 0.0
        %686 = vmatpush1.xpose.msra.mxu0 0.0
        %687 = vmatprep.subr.mxu0 0.0
        %688 = vmatpush1.xpose.msra.mxu0 0.0
        %689 = vmatprep.subr.mxu0 0.0
        %690 = vmatpush1.xpose.msra.mxu0 0.0
        %691 = vmatprep.subr.mxu0 0.0
        %692 = vmatpush1.xpose.msra.mxu0 0.0
        %693 = vmatprep.subr.mxu0 0.0
        %694 = vmatpush1.xpose.msra.mxu0 0.0
        %695 = vmatprep.subr.mxu0 0.0
        %696 = vmatpush1.xpose.msra.mxu0 0.0
        %697 = vmatprep.subr.mxu0 0.0
        %698 = vmatpush1.xpose.msra.mxu0 0.0
        %699 = vmatprep.subr.mxu0 0.0
        %700 = vmatpush1.xpose.msra.mxu0 0.0
        %701 = vmatprep.subr.mxu0 0.0
        %702 = vmatpush1.xpose.msra.mxu0 0.0
        %703 = vmatprep.subr.mxu0 0.0
        %704 = vmatpush1.xpose.msra.mxu0 0.0
        %705 = vmatprep.subr.mxu0 0.0
        %706 = vmatpush1.xpose.msra.mxu0 0.0
        %707 = vmatprep.subr.mxu0 0.0
        %708 = vmatpush1.xpose.msra.mxu0 0.0
        %709 = vmatprep.subr.mxu0 0.0
        %710 = vmatpush1.xpose.msra.mxu0 0.0
        %711 = vmatprep.subr.mxu0 0.0
        %712 = vmatpush1.xpose.msra.mxu0 0.0
        %713 = vmatprep.subr.mxu0 0.0
        %714 = vmatpush1.xpose.msra.mxu0 0.0
        %715 = vmatprep.subr.mxu0 0.0
        %716 = vmatpush1.xpose.msra.mxu0 0.0
        %717 = vmatprep.subr.mxu0 0.0
        %718 = vmatpush1.xpose.msra.mxu0 0.0
        %719 = vmatprep.subr.mxu0 0.0
        %720 = vmatpush1.xpose.msra.mxu0 0.0
        %721 = vmatprep.subr.mxu0 0.0
        %722 = vmatpush1.xpose.msra.mxu0 0.0
        %723 = vmatprep.subr.mxu0 0.0
        %724 = vmatpush1.xpose.msra.mxu0 0.0
        %725 = vmatprep.subr.mxu0 0.0
        %726 = vmatpush1.xpose.msra.mxu0 0.0
        %727 = vmatprep.subr.mxu0 0.0
        %728 = vmatpush1.xpose.msra.mxu0 0.0
        %729 = vmatprep.subr.mxu0 0.0
        %730 = vmatpush1.xpose.msra.mxu0 0.0
        %731 = vmatprep.subr.mxu0 0.0
        %732 = vmatpush1.xpose.msra.mxu0 0.0
        %733 = vmatprep.subr.mxu0 0.0
        %734 = vmatpush1.xpose.msra.mxu0 0.0
        %735 = vmatprep.subr.mxu0 0.0
        %736 = vmatpush1.xpose.msra.mxu0 0.0
        %737 = vmatprep.subr.mxu0 0.0
        %738 = vmatpush1.xpose.msra.mxu0 0.0
        %739 = vmatprep.subr.mxu0 0.0
        %740 = vmatpush1.xpose.msra.mxu0 0.0
        %741 = vmatprep.mubr.f32.mxu0 0.0
        %742 = vmatmul.mubr.f32.gmra.mrb[0].mxu0 %v669
        %v743 = vpop.f32.mrb[0].mxu0
        %v744 = vadd.f32 0.0, %v743
        %v745 = vpop.f32.mrb[0].mxu0
        %746 = vdwg.mxu0
        %v747 = vrcp.pop %v579
        %v748 = vmul.f32 1.0, %v747
        %v749 = vrcp.pop %v582
        %v750 = vmul.f32 1.0, %v749
        %v751 = vrcp.pop %v585
        %v752 = vmul.f32 1.0, %v751
        %v753 = vrcp.pop %v588
        %v754 = vmul.f32 1.0, %v753
        %v759 = vlaneseq
        %v760 = vand.u32 %v759, 127
        %v761 = vlaneseq
        %v762 = vshrl.u32 %v761, 7
        %v763 = vsub.s32 %v760, %v762
        %v764 = vrot.slane %v748, %v763
        %v765 = vadd.s32 %v760, 4294967288
        %v766 = vlaneseq
        %v767 = vshrl.u32 %v766, 7
        %v768 = vsub.s32 %v765, %v767
        %v769 = vrot.slane %v750, %v768
        %vm770 = vcmask 130112
        %v771 = vsel %vm770, %v769, %v764
        %v772 = vlaneseq
        %v773 = vshrl.u32 %v772, 7
        %v774 = vsub.s32 %v760, %v773
        %v775 = vrot.slane %v752, %v774
        %v776 = vlaneseq
        %v777 = vshrl.u32 %v776, 7
        %v778 = vsub.s32 %v765, %v777
        %v779 = vrot.slane %v754, %v778
        %v780 = vsel %vm770, %v779, %v775
        %vm781 = vcmask 1042434
        %v782 = vsel %vm781, %v771, %v771
        %vm783 = vcmask 1043459
        %v784 = vsel %vm783, %v771, %v782
        %v785 = vsel %vm781, %v780, %v780
        %v786 = vsel %vm783, %v780, %v785
        %v789 = vmul.f32 %v665, %v784
        %v790 = vmul.f32 %v744, %v786
        %vm791 = vcmask 125952
        %792 = vst.msk [vmem:[%s305] sm:$0xf] %vm791, %v789
        %793 = vst.msk [vmem:[%s305 + $0x4] sm:$0xf] %vm791, %v790
        %s794 = sand.u32 %s140, 1
        %s795 = scalar_lea.sflag [#allocation4], %s794
        %s796 = sand.u32 %s140, 1
        %s797 = smul.addr %s796, 8
        %s798 = scalar_lea.vmem [#allocation8], %s797
        // Predicated region
        $region45: #{tpu_custom_call.1} parent=31 // pred_check
          %p799 = pneg %p150
        $region46: #{tpu_custom_call.1} parent=31 // pred_check_branch
          %801 = sbr.rel (%p799) target = $region48
        $region47: #{tpu_custom_call.1} parent=31 // pred_region
          %s802 = smul.u32 2, %s29
          %s804 = ssub.s32 128, 128
          %805 = vsyncadd %s795, %s804
          %s806 = sadd.s32 %s30, %s802
          %s807 = smul.addr %s28, 2
          %s808 = sadd.s32 %s806, %s807
          %s809 = smul.addr %s808, 64
          %s810 = scalar_lea.hbm %s3, %s809
          %s811 = sshll.u32 %s798, 4
          %s812 = int_to_ptr.vmem [resolvable:$true] %s811
          %817 = dma.vmem_to_hbm [thread:$0]  %s812, 128, %s810, %s795, 64, 64, 4
        $region48: #{tpu_custom_call.1} parent=31 // pred_fallthru
          _
      $region32: #{tpu_custom_call.1} parent=5 // pred_fallthru
        _
      %p818 = scmp.le.s32.totalorder 2, %s18
      // Predicated region
      $region49: #{tpu_custom_call.1} parent=5 // pred_check
        %p819 = pneg %p818
      $region50: #{tpu_custom_call.1} parent=5 // pred_check_branch
        %821 = sbr.rel (%p819) target = $region52
      $region51: #{tpu_custom_call.1} parent=5 // pred_region
        %s822 = ssub.s32 %s18, 2
        // Predicated region
        $region53: #{tpu_custom_call.1} parent=51 // pred_check
          %p823 = pneg %p156
        $region54: #{tpu_custom_call.1} parent=51 // pred_check_branch
          %825 = sbr.rel (%p823) target = $region56
        $region55: #{tpu_custom_call.1} parent=51 // pred_region
          %s826 = sand.u32 %s141, 1
          %s827 = scalar_lea.sflag [#allocation4], %s826
          %s828 = sand.u32 %s141, 1
          %s829 = smul.addr %s828, 8
          %s830 = scalar_lea.vmem [#allocation8], %s829
          %831 = dma.done %s827, 128
        $region56: #{tpu_custom_call.1} parent=51 // pred_fallthru
          _
      $region52: #{tpu_custom_call.1} parent=5 // pred_fallthru
        _
    $region6: #{tpu_custom_call.1} parent=1 // loop_footer
      %s22 = sadd.s32 1, %s18
    $region7: #{tpu_custom_call.1} parent=1 // loop_footer_branch
      %17 = sbr.rel target = $region3
    $region8: #{tpu_custom_call.1} parent=1 // loop_exit
      _
    %832 = vsyncpa [#allocation3], 1
    %s833 = scalar_lea.sflag [#allocation3], 1
    %834 = vsyncpa %s833, 1
    %835 = vsyncpa [#allocation6], 1
    %s836 = scalar_lea.sflag [#allocation6], 1
    %837 = vsyncpa %s836, 1
    %838 = vsyncpa [#allocation4], 1
    %s839 = scalar_lea.sflag [#allocation4], 1
    %840 = vsyncpa %s839, 1

</llo_original>
